<compile_context>
chip_gen: v5e
topology: v5e:2x2
jax: 0.10.0
libtpu: 0.0.40
codegen_flags: <defaults>
</compile_context>

<pallas_src>
import jax
import jax.numpy as jnp
import numpy as np
from jax.experimental import pallas as pl
from jax.experimental.pallas import tpu as pltpu


def _round_up(a, b):
    return (a + b - 1) // b * b


def _mish(x):
    # mish(x) = x * tanh(softplus(x)) = x * (e^2 + 2e) / (e^2 + 2e + 2), e = exp(x)
    # Clamp at 20: for x > 20 the ratio is already 1.0 to f32 precision, and the
    # clamp prevents exp overflow.  One EUP exp + one approx reciprocal.
    e = jnp.exp(jnp.minimum(x, 20.0))
    n = e * (e + 2.0)
    return x * n * pl.reciprocal(n + 2.0, approx=True)


def ffn_kernel(x_ref, w1_ref, b1_ref, g_ref, beta_ref, w2_ref, b2_ref, o_ref):
    # x_ref: (TM, Dp) bf16, w1: (Dp, H) bf16, w2: (H, Dp) bf16 -> bf16 MXU ops,
    # f32 accumulation.  All post-matmul math (LN / Mish) stays in f32.

    # ---- liner1 ----
    h = jnp.dot(x_ref[...], w1_ref[...], preferred_element_type=jnp.float32)
    h = h + b1_ref[...]

    # ---- LayerNorm over hidden dim (eps = 1e-5), single reduction pass ----
    hdim = h.shape[-1]
    s = jnp.sum(h, axis=-1, keepdims=True)
    s2 = jnp.sum(h * h, axis=-1, keepdims=True)
    mu = s * (1.0 / hdim)
    var = jnp.maximum(s2 * (1.0 / hdim) - mu * mu, 0.0)
    scale = jax.lax.rsqrt(var + 1e-5) * g_ref[...]
    hn = (h - mu) * scale + beta_ref[...]

    # ---- Mish ----
    a = _mish(hn)

    # ---- Dropout: eval mode -> identity ----

    # ---- liner2 ----
    y = jnp.dot(a.astype(w2_ref.dtype), w2_ref[...],
                preferred_element_type=jnp.float32)
    y = y + b2_ref[...]

    # ---- Mish ----
    o_ref[...] = _mish(y).astype(o_ref.dtype)


def feed_forward(x, params):
    """x: (B, S, D) float32.  params: dict of w1, b1, gamma, beta, w2, b2
    (weights stored pre-transposed as (in, out), matching y = x @ W + b)."""
    B, S, D = x.shape
    H = params["w1"].shape[1]          # 4 * D, the LayerNorm dim (kept unpadded)
    N = B * S

    LANE = 128
    Dp = _round_up(D, LANE)                      # lane-align the feature dim
    TM = min(256, _round_up(N, 8))               # row tile (MXU-friendly, >= 8)
    Np = _round_up(N, TM)                        # pad rows to a tile multiple

    # Pad & cast matmul operands to bf16; small per-feature vectors stay f32.
    x2 = jnp.zeros((Np, Dp), jnp.bfloat16).at[:N, :D].set(
        x.reshape(N, D).astype(jnp.bfloat16))
    w1 = jnp.zeros((Dp, H), jnp.bfloat16).at[:D, :].set(
        params["w1"].astype(jnp.bfloat16))
    w2 = jnp.zeros((H, Dp), jnp.bfloat16).at[:, :D].set(
        params["w2"].astype(jnp.bfloat16))
    b1 = params["b1"].astype(jnp.float32)
    gamma = params["gamma"].astype(jnp.float32)
    beta = params["beta"].astype(jnp.float32)
    b2 = jnp.zeros((1, Dp), jnp.float32).at[:, :D].set(
        params["b2"].astype(jnp.float32))

    out = pl.pallas_call(
        ffn_kernel,
        out_shape=jax.ShapeDtypeStruct((Np, Dp), x.dtype),
        grid_spec=pltpu.PrefetchScalarGridSpec(
            num_scalar_prefetch=0,
            grid=(Np // TM,),
            in_specs=[
                pl.BlockSpec((TM, Dp), lambda i: (i, 0)),   # x rows (pipelined)
                pl.BlockSpec((Dp, H), lambda i: (0, 0)),    # w1 (VMEM-resident)
                pl.BlockSpec((1, H), lambda i: (0, 0)),     # b1
                pl.BlockSpec((1, H), lambda i: (0, 0)),     # ln gamma
                pl.BlockSpec((1, H), lambda i: (0, 0)),     # ln beta
                pl.BlockSpec((H, Dp), lambda i: (0, 0)),    # w2 (VMEM-resident)
                pl.BlockSpec((1, Dp), lambda i: (0, 0)),    # b2
            ],
            out_specs=pl.BlockSpec((TM, Dp), lambda i: (i, 0)),
        ),
        compiler_params=pltpu.CompilerParams(
            dimension_semantics=("parallel",),     # shard row tiles across TCs
            vmem_limit_bytes=64 * 1024 * 1024,
        ),
    )(x2, w1, b1, gamma, beta, w2, b2)

    return out[:N, :D].reshape(B, S, D)


def init_params(key, in_features):
    """Deterministic init mimicking nn.Linear default (uniform +/- 1/sqrt(fan_in))
    and nn.LayerNorm default (gamma=1, beta=0)."""
    H = in_features * 4
    k1, k2, k3, k4 = jax.random.split(key, 4)
    bound1 = 1.0 / np.sqrt(in_features)
    bound2 = 1.0 / np.sqrt(H)
    w1 = jax.random.uniform(k1, (in_features, H), jnp.float32, -bound1, bound1)
    b1 = jax.random.uniform(k2, (1, H), jnp.float32, -bound1, bound1)
    w2 = jax.random.uniform(k3, (H, in_features), jnp.float32, -bound2, bound2)
    b2 = jax.random.uniform(k4, (1, in_features), jnp.float32, -bound2, bound2)
    gamma = jnp.ones((1, H), jnp.float32)
    beta = jnp.zeros((1, H), jnp.float32)
    return dict(w1=w1, b1=b1, gamma=gamma, beta=beta, w2=w2, b2=b2)


def feed_forward_ref(x, p):
    """Pure-JAX f32 reference for correctness check."""
    h = x @ p["w1"] + p["b1"][0]
    mu = jnp.mean(h, axis=-1, keepdims=True)
    var = jnp.mean((h - mu) ** 2, axis=-1, keepdims=True)
    hn = (h - mu) / jnp.sqrt(var + 1e-5) * p["gamma"][0] + p["beta"][0]
    a = hn * jnp.tanh(jax.nn.softplus(hn))
    y = a @ p["w2"] + p["b2"][0]
    return y * jnp.tanh(jax.nn.softplus(y))


if __name__ == "__main__":
    key = jax.random.PRNGKey(0)
    kx, kp = jax.random.split(key)

    B, S, D = 2, 8, 32                       # inFeatures = 32, hidden = 128
    x = jax.random.normal(kx, (B, S, D), jnp.float32)
    params = init_params(kp, D)

    out = jax.block_until_ready(feed_forward(x, params))

    ref = feed_forward_ref(x, params)
    assert out.shape == (B, S, D)
    # bf16 MXU operands + approx reciprocal => compare against the f32 reference
    # with a correspondingly loosened tolerance.
    np.testing.assert_allclose(np.asarray(out), np.asarray(ref),
                               rtol=2e-2, atol=2e-2)

    print("KERNEL_OK")
</pallas_src>

<mosaic_0001>
module attributes {stable_mosaic.version = 11 : i64} {
  func.func @ffn_kernel(%arg0: i32, %arg1: memref<16x128xbf16, #tpu.memory_space<vmem>>, %arg2: memref<128x128xbf16, #tpu.memory_space<vmem>>, %arg3: memref<1x128xf32, #tpu.memory_space<vmem>>, %arg4: memref<1x128xf32, #tpu.memory_space<vmem>>, %arg5: memref<1x128xf32, #tpu.memory_space<vmem>>, %arg6: memref<128x128xbf16, #tpu.memory_space<vmem>>, %arg7: memref<1x128xf32, #tpu.memory_space<vmem>>, %arg8: memref<16x128xf32, #tpu.memory_space<vmem>>) attributes {dimension_semantics = [#tpu.dimension_semantics<parallel>], iteration_bounds = array<i64: 1>, scalar_prefetch = 0 : i64, scratch_operands = 0 : i64, tpu.core_type = #tpu.core_type<tc>, window_params = [{transform_indices = @transform_0, window_bounds = array<i64: 16, 128>}, {pipeline_mode = #tpu.pipeline_mode<synchronous>, transform_indices = @transform_1, window_bounds = array<i64: 128, 128>}, {pipeline_mode = #tpu.pipeline_mode<synchronous>, transform_indices = @transform_2, window_bounds = array<i64: 1, 128>}, {pipeline_mode = #tpu.pipeline_mode<synchronous>, transform_indices = @transform_3, window_bounds = array<i64: 1, 128>}, {pipeline_mode = #tpu.pipeline_mode<synchronous>, transform_indices = @transform_4, window_bounds = array<i64: 1, 128>}, {pipeline_mode = #tpu.pipeline_mode<synchronous>, transform_indices = @transform_5, window_bounds = array<i64: 128, 128>}, {pipeline_mode = #tpu.pipeline_mode<synchronous>, transform_indices = @transform_6, window_bounds = array<i64: 1, 128>}, {transform_indices = @transform_7, window_bounds = array<i64: 16, 128>}]} {
    %c0 = arith.constant 0 : index
    %c0_0 = arith.constant 0 : index
    %0 = vector.load %arg1[%c0, %c0_0] : memref<16x128xbf16, #tpu.memory_space<vmem>>, vector<16x128xbf16>
    %c0_1 = arith.constant 0 : index
    %c0_2 = arith.constant 0 : index
    %1 = vector.load %arg2[%c0_1, %c0_2] : memref<128x128xbf16, #tpu.memory_space<vmem>>, vector<128x128xbf16>
    %cst = arith.constant dense<0.000000e+00> : vector<16x128xf32>
    %2 = tpu.matmul %0, %1, %cst {dimension_numbers = #tpu.dot_dimension_numbers<[1], [0], [0], [1], [0, 0, 1, 1], [], []>} : vector<16x128xbf16>, vector<128x128xbf16>, vector<16x128xf32> -> vector<16x128xf32>
    %c0_3 = arith.constant 0 : index
    %c0_4 = arith.constant 0 : index
    %3 = vector.load %arg3[%c0_3, %c0_4] : memref<1x128xf32, #tpu.memory_space<vmem>>, vector<1x128xf32>
    %4 = vector.broadcast %3 : vector<1x128xf32> to vector<16x128xf32>
    %5 = arith.addf %2, %4 : vector<16x128xf32>
    %cst_5 = arith.constant dense<0.000000e+00> : vector<16xf32>
    %6 = vector.multi_reduction <add>, %5, %cst_5 [1] : vector<16x128xf32> to vector<16xf32>
    %7 = vector.shape_cast %6 : vector<16xf32> to vector<16x1xf32>
    %8 = arith.mulf %5, %5 : vector<16x128xf32>
    %cst_6 = arith.constant dense<0.000000e+00> : vector<16xf32>
    %9 = vector.multi_reduction <add>, %8, %cst_6 [1] : vector<16x128xf32> to vector<16xf32>
    %10 = vector.shape_cast %9 : vector<16xf32> to vector<16x1xf32>
    %cst_7 = arith.constant 7.812500e-03 : f32
    %11 = vector.broadcast %cst_7 : f32 to vector<16x1xf32>
    %12 = arith.mulf %7, %11 : vector<16x1xf32>
    %cst_8 = arith.constant 7.812500e-03 : f32
    %13 = vector.broadcast %cst_8 : f32 to vector<16x1xf32>
    %14 = arith.mulf %10, %13 : vector<16x1xf32>
    %15 = arith.mulf %12, %12 : vector<16x1xf32>
    %16 = arith.subf %14, %15 : vector<16x1xf32>
    %cst_9 = arith.constant 0.000000e+00 : f32
    %17 = vector.broadcast %cst_9 : f32 to vector<16x1xf32>
    %18 = arith.maximumf %16, %17 : vector<16x1xf32>
    %cst_10 = arith.constant 9.99999974E-6 : f32
    %19 = vector.broadcast %cst_10 : f32 to vector<16x1xf32>
    %20 = arith.addf %18, %19 : vector<16x1xf32>
    %21 = math.rsqrt %20 : vector<16x1xf32>
    %c0_11 = arith.constant 0 : index
    %c0_12 = arith.constant 0 : index
    %22 = vector.load %arg4[%c0_11, %c0_12] : memref<1x128xf32, #tpu.memory_space<vmem>>, vector<1x128xf32>
    %23 = vector.broadcast %21 : vector<16x1xf32> to vector<16x128xf32>
    %24 = vector.broadcast %22 : vector<1x128xf32> to vector<16x128xf32>
    %25 = arith.mulf %23, %24 : vector<16x128xf32>
    %26 = vector.broadcast %12 : vector<16x1xf32> to vector<16x128xf32>
    %27 = arith.subf %5, %26 : vector<16x128xf32>
    %28 = arith.mulf %27, %25 : vector<16x128xf32>
    %c0_13 = arith.constant 0 : index
    %c0_14 = arith.constant 0 : index
    %29 = vector.load %arg5[%c0_13, %c0_14] : memref<1x128xf32, #tpu.memory_space<vmem>>, vector<1x128xf32>
    %30 = vector.broadcast %29 : vector<1x128xf32> to vector<16x128xf32>
    %31 = arith.addf %28, %30 : vector<16x128xf32>
    %cst_15 = arith.constant 2.000000e+01 : f32
    %32 = vector.broadcast %cst_15 : f32 to vector<16x128xf32>
    %33 = arith.minimumf %31, %32 : vector<16x128xf32>
    %34 = math.exp %33 : vector<16x128xf32>
    %cst_16 = arith.constant 2.000000e+00 : f32
    %35 = vector.broadcast %cst_16 : f32 to vector<16x128xf32>
    %36 = arith.addf %34, %35 : vector<16x128xf32>
    %37 = arith.mulf %34, %36 : vector<16x128xf32>
    %38 = arith.mulf %31, %37 : vector<16x128xf32>
    %cst_17 = arith.constant 2.000000e+00 : f32
    %39 = vector.broadcast %cst_17 : f32 to vector<16x128xf32>
    %40 = arith.addf %37, %39 : vector<16x128xf32>
    %41 = tpu.reciprocal %40 {approx = true} : vector<16x128xf32> -> vector<16x128xf32>
    %42 = arith.mulf %38, %41 : vector<16x128xf32>
    %43 = arith.truncf %42 : vector<16x128xf32> to vector<16x128xbf16>
    %c0_18 = arith.constant 0 : index
    %c0_19 = arith.constant 0 : index
    %44 = vector.load %arg6[%c0_18, %c0_19] : memref<128x128xbf16, #tpu.memory_space<vmem>>, vector<128x128xbf16>
    %cst_20 = arith.constant dense<0.000000e+00> : vector<16x128xf32>
    %45 = tpu.matmul %43, %44, %cst_20 {dimension_numbers = #tpu.dot_dimension_numbers<[1], [0], [0], [1], [0, 0, 1, 1], [], []>} : vector<16x128xbf16>, vector<128x128xbf16>, vector<16x128xf32> -> vector<16x128xf32>
    %c0_21 = arith.constant 0 : index
    %c0_22 = arith.constant 0 : index
    %46 = vector.load %arg7[%c0_21, %c0_22] : memref<1x128xf32, #tpu.memory_space<vmem>>, vector<1x128xf32>
    %47 = vector.broadcast %46 : vector<1x128xf32> to vector<16x128xf32>
    %48 = arith.addf %45, %47 : vector<16x128xf32>
    %cst_23 = arith.constant 2.000000e+01 : f32
    %49 = vector.broadcast %cst_23 : f32 to vector<16x128xf32>
    %50 = arith.minimumf %48, %49 : vector<16x128xf32>
    %51 = math.exp %50 : vector<16x128xf32>
    %cst_24 = arith.constant 2.000000e+00 : f32
    %52 = vector.broadcast %cst_24 : f32 to vector<16x128xf32>
    %53 = arith.addf %51, %52 : vector<16x128xf32>
    %54 = arith.mulf %51, %53 : vector<16x128xf32>
    %55 = arith.mulf %48, %54 : vector<16x128xf32>
    %cst_25 = arith.constant 2.000000e+00 : f32
    %56 = vector.broadcast %cst_25 : f32 to vector<16x128xf32>
    %57 = arith.addf %54, %56 : vector<16x128xf32>
    %58 = tpu.reciprocal %57 {approx = true} : vector<16x128xf32> -> vector<16x128xf32>
    %59 = arith.mulf %55, %58 : vector<16x128xf32>
    %c0_26 = arith.constant 0 : index
    %c0_27 = arith.constant 0 : index
    %60 = vector.load %arg8[%c0_26, %c0_27] : memref<16x128xf32, #tpu.memory_space<vmem>>, vector<16x128xf32>
    tpu.vector_store %arg8[%c0_26, %c0_27], %59 {strides = array<i32>} : memref<16x128xf32, #tpu.memory_space<vmem>>, vector<16x128xf32>,
    return
  }
  func.func @transform_0(%arg0: i32) -> (i32, i32) {
    %c0_i32 = arith.constant 0 : i32
    %c0_i32_0 = arith.constant 0 : i32
    return %arg0, %c0_i32 : i32, i32
  }
  func.func @transform_1(%arg0: i32) -> (i32, i32) {
    %c0_i32 = arith.constant 0 : i32
    %c0_i32_0 = arith.constant 0 : i32
    %c0_i32_1 = arith.constant 0 : i32
    return %c0_i32, %c0_i32_0 : i32, i32
  }
  func.func @transform_2(%arg0: i32) -> (i32, i32) {
    %c0_i32 = arith.constant 0 : i32
    %c0_i32_0 = arith.constant 0 : i32
    %c0_i32_1 = arith.constant 0 : i32
    return %c0_i32, %c0_i32_0 : i32, i32
  }
  func.func @transform_3(%arg0: i32) -> (i32, i32) {
    %c0_i32 = arith.constant 0 : i32
    %c0_i32_0 = arith.constant 0 : i32
    %c0_i32_1 = arith.constant 0 : i32
    return %c0_i32, %c0_i32_0 : i32, i32
  }
  func.func @transform_4(%arg0: i32) -> (i32, i32) {
    %c0_i32 = arith.constant 0 : i32
    %c0_i32_0 = arith.constant 0 : i32
    %c0_i32_1 = arith.constant 0 : i32
    return %c0_i32, %c0_i32_0 : i32, i32
  }
  func.func @transform_5(%arg0: i32) -> (i32, i32) {
    %c0_i32 = arith.constant 0 : i32
    %c0_i32_0 = arith.constant 0 : i32
    %c0_i32_1 = arith.constant 0 : i32
    return %c0_i32, %c0_i32_0 : i32, i32
  }
  func.func @transform_6(%arg0: i32) -> (i32, i32) {
    %c0_i32 = arith.constant 0 : i32
    %c0_i32_0 = arith.constant 0 : i32
    %c0_i32_1 = arith.constant 0 : i32
    return %c0_i32, %c0_i32_0 : i32, i32
  }
  func.func @transform_7(%arg0: i32) -> (i32, i32) {
    %c0_i32 = arith.constant 0 : i32
    %c0_i32_0 = arith.constant 0 : i32
    return %arg0, %c0_i32 : i32, i32
  }
}

</mosaic_0001>

<llo_original>
// kernel: tpu_custom_call.1
$region0: #{tpu_custom_call.1}
  #allocation0 [shape = 'u32[]', space=smem, size = 0x4, offset = 0x4, fixed_abs, tag = 'smem constant byte address 0x4 - core index']
  #allocation1 [shape = 'u32[72,128]{1,0:T(1,128)}', space=vmem, size = 0x9000, scoped, tag = 'internal scratch']
  %s0 = inlined_call_operand.hbm [shape: bf16[16,128], index: 0, kind: input, shape index: {}]
  %s1 = inlined_call_operand.hbm [shape: bf16[128,128], index: 1, kind: input, shape index: {}]
  %s2 = inlined_call_operand.vmem [shape: f32[1,128], index: 2, kind: input, shape index: {}]
  %s3 = inlined_call_operand.vmem [shape: f32[1,128], index: 3, kind: input, shape index: {}]
  %s4 = inlined_call_operand.vmem [shape: f32[1,128], index: 4, kind: input, shape index: {}]
  %s5 = inlined_call_operand.hbm [shape: bf16[128,128], index: 5, kind: input, shape index: {}]
  %s6 = inlined_call_operand.vmem [shape: f32[1,128], index: 6, kind: input, shape index: {}]
  %s7 = inlined_call_operand.hbm [shape: f32[16,128], index: 7, kind: output, shape index: {}]
  %s8 = sld [smem:[#allocation0]]
  $region50: #{tpu_custom_call.1} parent=0
    _
  %s10 = ssub.s32 1, %s8
  %s11 = scalar_select 0, %s10, %s8
  $region1: #{tpu_custom_call.1} parent=0
    #allocation2 [shape = 'u8[4096]{0}', space=vmem, size = 0x1000, scoped, tag = 'input window, operand 0, single buffered']
    #allocation3 [shape = 's32[1]{0}', space=sflag, size = 0x4, scoped, tag = 'scoped memory for tpu_custom_call.1']
    #allocation4 [shape = 's32[1]{0}', space=sflag, size = 0x4, scoped, tag = 'scoped memory for tpu_custom_call.1']
    #allocation5 [shape = 'u8[32768]{0}', space=vmem, size = 0x8000, scoped, tag = 'input window, operand 1, single buffered']
    #allocation6 [shape = 's32[1]{0}', space=sflag, size = 0x4, scoped, tag = 'scoped memory for tpu_custom_call.1']
    #allocation7 [shape = 'u8[32768]{0}', space=vmem, size = 0x8000, scoped, tag = 'input window, operand 5, single buffered']
    #allocation8 [shape = 'u8[8192]{0}', space=vmem, size = 0x2000, scoped, tag = 'output window, operand 0, single buffered']
    %12 = vsyncpa [#allocation3], 0
    %13 = vsyncpa [#allocation6], 0
    %14 = vsyncpa [#allocation4], 0
    // Predicated region
    $region2: #{tpu_custom_call.1} parent=1 // pred_check
      _
    $region3: #{tpu_custom_call.1} parent=1 // pred_check_branch
      %16 = sbr.rel (0) target = $region5
    $region4: #{tpu_custom_call.1} parent=1 // pred_region
      %18 = vsyncadd [#allocation3], 0
      %s19 = sshll.u32 %s0, 4
      %s20 = int_to_ptr.hbm [resolvable:$true] %s19
      %s21 = sshll.u32 [#allocation2], 4
      %s22 = int_to_ptr.vmem [resolvable:$true] %s21
      %27 = dma.hbm_to_vmem [thread:$0]  %s20, 128, %s22, [#allocation3], 64, 64, 4
    $region5: #{tpu_custom_call.1} parent=1 // pred_fallthru
      _
    // Predicated region
    $region6: #{tpu_custom_call.1} parent=1 // pred_check
      _
    $region7: #{tpu_custom_call.1} parent=1 // pred_check_branch
      %29 = sbr.rel (0) target = $region9
    $region8: #{tpu_custom_call.1} parent=1 // pred_region
      %31 = vsyncadd [#allocation6], 0
      %s32 = sshll.u32 %s1, 4
      %s33 = int_to_ptr.hbm [resolvable:$true] %s32
      %s34 = sshll.u32 [#allocation5], 4
      %s35 = int_to_ptr.vmem [resolvable:$true] %s34
      %40 = dma.hbm_to_vmem [thread:$0]  %s33, 1024, %s35, [#allocation6], 64, 64, 4
    $region9: #{tpu_custom_call.1} parent=1 // pred_fallthru
      _
    // Predicated region
    $region10: #{tpu_custom_call.1} parent=1 // pred_check
      _
    $region11: #{tpu_custom_call.1} parent=1 // pred_check_branch
      %42 = sbr.rel (0) target = $region13
    $region12: #{tpu_custom_call.1} parent=1 // pred_region
      _
    $region13: #{tpu_custom_call.1} parent=1 // pred_fallthru
      _
    // Predicated region
    $region14: #{tpu_custom_call.1} parent=1 // pred_check
      _
    $region15: #{tpu_custom_call.1} parent=1 // pred_check_branch
      %44 = sbr.rel (0) target = $region17
    $region16: #{tpu_custom_call.1} parent=1 // pred_region
      _
    $region17: #{tpu_custom_call.1} parent=1 // pred_fallthru
      _
    // Predicated region
    $region18: #{tpu_custom_call.1} parent=1 // pred_check
      _
    $region19: #{tpu_custom_call.1} parent=1 // pred_check_branch
      %46 = sbr.rel (0) target = $region21
    $region20: #{tpu_custom_call.1} parent=1 // pred_region
      _
    $region21: #{tpu_custom_call.1} parent=1 // pred_fallthru
      _
    // Predicated region
    $region22: #{tpu_custom_call.1} parent=1 // pred_check
      _
    $region23: #{tpu_custom_call.1} parent=1 // pred_check_branch
      %48 = sbr.rel (0) target = $region25
    $region24: #{tpu_custom_call.1} parent=1 // pred_region
      %50 = vsyncadd [#allocation6], 0
      %s51 = sshll.u32 %s5, 4
      %s52 = int_to_ptr.hbm [resolvable:$true] %s51
      %s53 = sshll.u32 [#allocation7], 4
      %s54 = int_to_ptr.vmem [resolvable:$true] %s53
      %59 = dma.hbm_to_vmem [thread:$0]  %s52, 1024, %s54, [#allocation6], 64, 64, 4
    $region25: #{tpu_custom_call.1} parent=1 // pred_fallthru
      _
    // Predicated region
    $region26: #{tpu_custom_call.1} parent=1 // pred_check
      _
    $region27: #{tpu_custom_call.1} parent=1 // pred_check_branch
      %61 = sbr.rel (0) target = $region29
    $region28: #{tpu_custom_call.1} parent=1 // pred_region
      _
    $region29: #{tpu_custom_call.1} parent=1 // pred_fallthru
      _
    // Predicated region
    $region30: #{tpu_custom_call.1} parent=1 // pred_check
      _
    $region31: #{tpu_custom_call.1} parent=1 // pred_check_branch
      %63 = sbr.rel (0) target = $region33
    $region32: #{tpu_custom_call.1} parent=1 // pred_region
      %65 = dma.done [#allocation3], 128
    $region33: #{tpu_custom_call.1} parent=1 // pred_fallthru
      _
    // Predicated region
    $region34: #{tpu_custom_call.1} parent=1 // pred_check
      _
    $region35: #{tpu_custom_call.1} parent=1 // pred_check_branch
      %67 = sbr.rel (0) target = $region37
    $region36: #{tpu_custom_call.1} parent=1 // pred_region
      %69 = dma.done [#allocation6], 1024
    $region37: #{tpu_custom_call.1} parent=1 // pred_fallthru
      _
    // Predicated region
    $region38: #{tpu_custom_call.1} parent=1 // pred_check
      _
    $region39: #{tpu_custom_call.1} parent=1 // pred_check_branch
      %71 = sbr.rel (0) target = $region41
    $region40: #{tpu_custom_call.1} parent=1 // pred_region
      %73 = dma.done [#allocation6], 1024
    $region41: #{tpu_custom_call.1} parent=1 // pred_fallthru
      _
    %v74 = vld [vmem:[#allocation2] sm:$0xf]
    %v75 = vld [vmem:[#allocation2 + $0x4] sm:$0xf]
    %v76 = vld [vmem:[#allocation5] sm:$0xf]
    %v77 = vld [vmem:[#allocation5 + $0x4] sm:$0xf]
    %v78 = vld [vmem:[#allocation5 + $0x8] sm:$0xf]
    %v79 = vld [vmem:[#allocation5 + $0xc] sm:$0xf]
    %v80 = vld [vmem:[#allocation5 + $0x10] sm:$0xf]
    %v81 = vld [vmem:[#allocation5 + $0x14] sm:$0xf]
    %v82 = vld [vmem:[#allocation5 + $0x18] sm:$0xf]
    %v83 = vld [vmem:[#allocation5 + $0x1c] sm:$0xf]
    %v84 = vld [vmem:[#allocation5 + $0x20] sm:$0xf]
    %v85 = vld [vmem:[#allocation5 + $0x24] sm:$0xf]
    %v86 = vld [vmem:[#allocation5 + $0x28] sm:$0xf]
    %v87 = vld [vmem:[#allocation5 + $0x2c] sm:$0xf]
    %v88 = vld [vmem:[#allocation5 + $0x30] sm:$0xf]
    %v89 = vld [vmem:[#allocation5 + $0x34] sm:$0xf]
    %v90 = vld [vmem:[#allocation5 + $0x38] sm:$0xf]
    %v91 = vld [vmem:[#allocation5 + $0x3c] sm:$0xf]
    %v92 = vld [vmem:[%s2] sm:$0x1]
    %v94 = vperm.slane %v92, 0
    %v98 = vunpack.c.l.b16 %v74
    %v99 = vunpack.c.l.b16 %v75
    %v100 = vpack.c.b16 %v99, %v98
    %v118 = vunpack.c.l.b16 %v76
    %v119 = vunpack.c.l.b16 %v77
    %v120 = vunpack.c.l.b16 %v78
    %v121 = vunpack.c.l.b16 %v79
    %v122 = vunpack.c.l.b16 %v80
    %v123 = vunpack.c.l.b16 %v81
    %v124 = vunpack.c.l.b16 %v82
    %v125 = vunpack.c.l.b16 %v83
    %v126 = vunpack.c.l.b16 %v84
    %v127 = vunpack.c.l.b16 %v85
    %v128 = vunpack.c.l.b16 %v86
    %v129 = vunpack.c.l.b16 %v87
    %v130 = vunpack.c.l.b16 %v88
    %v131 = vunpack.c.l.b16 %v89
    %v132 = vunpack.c.l.b16 %v90
    %v133 = vunpack.c.l.b16 %v91
    %v134 = vpack.c.b16 %v119, %v118
    %v135 = vpack.c.b16 %v121, %v120
    %v136 = vpack.c.b16 %v123, %v122
    %v137 = vpack.c.b16 %v125, %v124
    %v138 = vpack.c.b16 %v127, %v126
    %v139 = vpack.c.b16 %v129, %v128
    %v140 = vpack.c.b16 %v131, %v130
    %v141 = vpack.c.b16 %v133, %v132
    %150 = vmatpush.bf16.msra.mxu0 %v141
    %151 = vmatpush.bf16.msra.mxu0 %v140
    %152 = vmatpush.bf16.msra.mxu0 %v139
    %153 = vmatpush.bf16.msra.mxu0 %v138
    %154 = vmatpush.bf16.msra.mxu0 %v137
    %155 = vmatpush.bf16.msra.mxu0 %v136
    %156 = vmatpush.bf16.msra.mxu0 %v135
    %157 = vmatpush.bf16.msra.mxu0 %v134
    %158 = vmatmul.bf16.gmra.mxu0 %v100
    %v159 = vpop.f32.mrf.mxu0
    %v160 = vadd.f32 %v94, %v159
    %v161 = vpop.f32.mrf.mxu0
    %v162 = vadd.f32 %v94, %v161
    %163 = vdwg.mxu0
    %164 = vadd.xlane.f32.xlu0 %v160
    %v165 = vpop.xlane.xlu0 %164
    %166 = vadd.xlane.f32.xlu0 %v162
    %v167 = vpop.xlane.xlu0 %166
    %v168 = vmul.f32 %v160, %v160
    %v169 = vmul.f32 %v162, %v162
    %170 = vadd.xlane.f32.xlu0 %v168
    %v171 = vpop.xlane.xlu0 %170
    %172 = vadd.xlane.f32.xlu0 %v169
    %v173 = vpop.xlane.xlu0 %172
    %v174 = vmul.f32 %v165, 0.0078125
    %v175 = vmul.f32 %v167, 0.0078125
    %v176 = vmul.f32 %v171, 0.0078125
    %v177 = vmul.f32 %v173, 0.0078125
    %v178 = vmul.f32 %v174, %v174
    %v179 = vmul.f32 %v175, %v175
    %v180 = vsub.f32 %v176, %v178
    %v181 = vsub.f32 %v177, %v179
    %v182 = vmax.f32 %v180, 0.0
    %v183 = vmax.f32 %v181, 0.0
    %v184 = vadd.f32 %v182, 1e-05
    %v185 = vadd.f32 %v183, 1e-05
    %v186 = vrsqrt.pop %v184
    %v187 = vmul.f32 %v186, %v184
    %v188 = vmul.f32 %v187, %v186
    %v189 = vmul.f32 0.5, %v188
    %v190 = vsub.f32 1.5, %v189
    %v191 = vmul.f32 %v186, %v190
    %vm192 = vweird.f32 %v184
    %vm193 = vweird.f32 %v186
    %vm194 = vmor %vm192, %vm193
    %v195 = vsel %vm194, %v186, %v191
    %v196 = vrsqrt.pop %v185
    %v197 = vmul.f32 %v196, %v185
    %v198 = vmul.f32 %v197, %v196
    %v199 = vmul.f32 0.5, %v198
    %v200 = vsub.f32 1.5, %v199
    %v201 = vmul.f32 %v196, %v200
    %vm202 = vweird.f32 %v185
    %vm203 = vweird.f32 %v196
    %vm204 = vmor %vm202, %vm203
    %v205 = vsel %vm204, %v196, %v201
    %v206 = vld [vmem:[%s3] sm:$0x1]
    %v208 = vperm.slane %v206, 0
    %v210 = vmul.f32 %v195, %v208
    %v211 = vmul.f32 %v205, %v208
    %v212 = vsub.f32 %v160, %v174
    %v213 = vsub.f32 %v162, %v175
    %v214 = vmul.f32 %v212, %v210
    %v215 = vmul.f32 %v213, %v211
    %v216 = vld [vmem:[%s4] sm:$0x1]
    %v218 = vperm.slane %v216, 0
    %v220 = vadd.f32 %v214, %v218
    %v221 = vadd.f32 %v215, %v218
    %v222 = vmin.f32 %v220, 20.0
    %v223 = vmin.f32 %v221, 20.0
    %v224 = vmul.f32 %v222, 1.442695
    %v225 = vpow.pop %v224
    %v226 = vmul.f32 %v223, 1.442695
    %v227 = vpow.pop %v226
    %v228 = vadd.f32 %v225, 2.0
    %v229 = vadd.f32 %v227, 2.0
    %v230 = vmul.f32 %v225, %v228
    %v231 = vmul.f32 %v227, %v229
    %v232 = vmul.f32 %v220, %v230
    %v233 = vmul.f32 %v221, %v231
    %v234 = vadd.f32 %v230, 2.0
    %v235 = vadd.f32 %v231, 2.0
    %v236 = vrcp.pop %v234
    %v237 = vrcp.pop %v235
    %v238 = vmul.f32 %v232, %v236
    %v239 = vmul.f32 %v233, %v237
    %v240 = vpack.c.bf16 %v239, %v238
    %v241 = vld [vmem:[#allocation7] sm:$0xf]
    %v242 = vld [vmem:[#allocation7 + $0x4] sm:$0xf]
    %v243 = vld [vmem:[#allocation7 + $0x8] sm:$0xf]
    %v244 = vld [vmem:[#allocation7 + $0xc] sm:$0xf]
    %v245 = vld [vmem:[#allocation7 + $0x10] sm:$0xf]
    %v246 = vld [vmem:[#allocation7 + $0x14] sm:$0xf]
    %v247 = vld [vmem:[#allocation7 + $0x18] sm:$0xf]
    %v248 = vld [vmem:[#allocation7 + $0x1c] sm:$0xf]
    %v249 = vld [vmem:[#allocation7 + $0x20] sm:$0xf]
    %v250 = vld [vmem:[#allocation7 + $0x24] sm:$0xf]
    %v251 = vld [vmem:[#allocation7 + $0x28] sm:$0xf]
    %v252 = vld [vmem:[#allocation7 + $0x2c] sm:$0xf]
    %v253 = vld [vmem:[#allocation7 + $0x30] sm:$0xf]
    %v254 = vld [vmem:[#allocation7 + $0x34] sm:$0xf]
    %v255 = vld [vmem:[#allocation7 + $0x38] sm:$0xf]
    %v256 = vld [vmem:[#allocation7 + $0x3c] sm:$0xf]
    %v257 = vld [vmem:[%s6] sm:$0x1]
    %v259 = vperm.slane %v257, 0
    %v277 = vunpack.c.l.b16 %v241
    %v278 = vunpack.c.l.b16 %v242
    %v279 = vunpack.c.l.b16 %v243
    %v280 = vunpack.c.l.b16 %v244
    %v281 = vunpack.c.l.b16 %v245
    %v282 = vunpack.c.l.b16 %v246
    %v283 = vunpack.c.l.b16 %v247
    %v284 = vunpack.c.l.b16 %v248
    %v285 = vunpack.c.l.b16 %v249
    %v286 = vunpack.c.l.b16 %v250
    %v287 = vunpack.c.l.b16 %v251
    %v288 = vunpack.c.l.b16 %v252
    %v289 = vunpack.c.l.b16 %v253
    %v290 = vunpack.c.l.b16 %v254
    %v291 = vunpack.c.l.b16 %v255
    %v292 = vunpack.c.l.b16 %v256
    %v293 = vpack.c.b16 %v278, %v277
    %v294 = vpack.c.b16 %v280, %v279
    %v295 = vpack.c.b16 %v282, %v281
    %v296 = vpack.c.b16 %v284, %v283
    %v297 = vpack.c.b16 %v286, %v285
    %v298 = vpack.c.b16 %v288, %v287
    %v299 = vpack.c.b16 %v290, %v289
    %v300 = vpack.c.b16 %v292, %v291
    %309 = vmatpush.bf16.msra.mxu0 %v300
    %310 = vmatpush.bf16.msra.mxu0 %v299
    %311 = vmatpush.bf16.msra.mxu0 %v298
    %312 = vmatpush.bf16.msra.mxu0 %v297
    %313 = vmatpush.bf16.msra.mxu0 %v296
    %314 = vmatpush.bf16.msra.mxu0 %v295
    %315 = vmatpush.bf16.msra.mxu0 %v294
    %316 = vmatpush.bf16.msra.mxu0 %v293
    %317 = vmatmul.bf16.gmra.mxu0 %v240
    %v318 = vpop.f32.mrf.mxu0
    %v319 = vadd.f32 %v259, %v318
    %v320 = vpop.f32.mrf.mxu0
    %v321 = vadd.f32 %v259, %v320
    %322 = vdwg.mxu0
    %v323 = vmin.f32 %v319, 20.0
    %v324 = vmin.f32 %v321, 20.0
    %v325 = vmul.f32 %v323, 1.442695
    %v326 = vpow.pop %v325
    %v327 = vmul.f32 %v324, 1.442695
    %v328 = vpow.pop %v327
    %v329 = vadd.f32 %v326, 2.0
    %v330 = vadd.f32 %v328, 2.0
    %v331 = vmul.f32 %v326, %v329
    %v332 = vmul.f32 %v328, %v330
    %v333 = vmul.f32 %v319, %v331
    %v334 = vmul.f32 %v321, %v332
    %v335 = vadd.f32 %v331, 2.0
    %v336 = vadd.f32 %v332, 2.0
    %v337 = vrcp.pop %v335
    %v338 = vrcp.pop %v336
    %v339 = vmul.f32 %v333, %v337
    %v340 = vmul.f32 %v334, %v338
    %341 = vst [vmem:[#allocation8] sm:$0xff] %v339
    %342 = vst [vmem:[#allocation8 + $0x8] sm:$0xff] %v340
    // Predicated region
    $region42: #{tpu_custom_call.1} parent=1 // pred_check
      _
    $region43: #{tpu_custom_call.1} parent=1 // pred_check_branch
      %344 = sbr.rel (0) target = $region45
    $region44: #{tpu_custom_call.1} parent=1 // pred_region
      %346 = vsyncadd [#allocation4], 0
      %s347 = sshll.u32 [#allocation8], 4
      %s348 = int_to_ptr.vmem [resolvable:$true] %s347
      %s349 = sshll.u32 %s7, 4
      %s350 = int_to_ptr.hbm [resolvable:$true] %s349
      %355 = dma.vmem_to_hbm [thread:$0]  %s348, 256, %s350, [#allocation4], 128, 128, 8
    $region45: #{tpu_custom_call.1} parent=1 // pred_fallthru
      _
    // Predicated region
    $region46: #{tpu_custom_call.1} parent=1 // pred_check
      _
    $region47: #{tpu_custom_call.1} parent=1 // pred_check_branch
      %357 = sbr.rel (0) target = $region49
    $region48: #{tpu_custom_call.1} parent=1 // pred_region
      %359 = dma.done [#allocation4], 256
    $region49: #{tpu_custom_call.1} parent=1 // pred_fallthru
      _
    %360 = vsyncpa [#allocation3], 1
    %361 = vsyncpa [#allocation6], 1
    %362 = vsyncpa [#allocation4], 1

</llo_original>
